<compile_context>
chip_gen: v5e
topology: v5e:2x2
jax: 0.10.0
libtpu: 0.0.40
codegen_flags: <defaults>
</compile_context>

<pallas_src>
import functools
import math

import jax
import jax.numpy as jnp
import numpy as np
from jax.experimental import pallas as pl
from jax.experimental.pallas import tpu as pltpu


def _resconv_kernel(patch_ref, w9t_ref, bias_ref, alpha_ref, emb_ref, out_ref,
                    *, C):
    # patch_ref: (1, 9*C, rows) im2col block, K ordered (kh, kw, ci), rows in lanes.
    p = patch_ref[0]                                              # (9C, rows)

    # 3x3 dilated conv == one fused matmul (beta pre-folded into w9t / bias).
    acc = jnp.dot(w9t_ref[...], p,
                  preferred_element_type=jnp.float32)             # (C, rows) f32

    # Residual: the centre tap (kh=1, kw=1) of the im2col block IS x itself.
    # Sublane slice at offset 4*C (multiple of 8) -> cheap, no extra input.
    x_center = p[4 * C:5 * C, :].astype(jnp.float32)              # (C, rows)

    # (W x + b) * beta + x  ==  (W*beta) x + b*beta + x   (beta folded in wrapper)
    z = acc + bias_ref[...] + x_center
    # per-channel PReLU(0.2)
    y = jnp.where(z >= 0, z, alpha_ref[...] * z)

    # + per-batch time embedding (C, 1), broadcast over all spatial positions.
    out_ref[0] = (y + emb_ref[0]).astype(out_ref.dtype)


def _pick_row_tile(n_rows, c, itemsize, budget_bytes=4 * 1024 * 1024):
    """Largest spatial row tile that divides n_rows, is a multiple of 128 (lane
    density) and keeps the im2col block under `budget_bytes`, so double-buffered
    blocks fit comfortably inside the 32 MiB scoped-VMEM default (v7x: 64 MiB
    physical VMEM)."""
    max_rows = max(128, budget_bytes // (9 * c * itemsize))
    if n_rows <= max_rows:
        return n_rows
    t = (max_rows // 128) * 128
    while t >= 128:
        if n_rows % t == 0:
            return t
        t -= 128
    # TODO(synk): ragged H*W with no 128-multiple divisor falls back to a single
    # full tile (may exceed the budget for unusual shapes).
    return n_rows


def resconv_forward(x_nchw, time, params, dilation=1, row_tile=None):
    """Pallas implementation of ResConv.forward((x, time)) -> (y, time)."""
    B, C, H, W = x_nchw.shape
    d = dilation
    dtype = x_nchw.dtype

    # ---- parameter prep (cheap one-off plain-JAX work) ----
    beta = params['beta'].reshape(C)
    # Fold beta:  (W x + b) * beta + x == (W*beta) x + b*beta + x
    # (O, I, 3, 3) -> (O, kh, kw, I) -> (O, 9*I); columns ordered (kh, kw, ci)
    # to match the im2col tap concatenation below.
    w9t = jnp.transpose(params['wconv'], (0, 2, 3, 1)).reshape(C, 9 * C)
    w9t = (w9t * beta[:, None]).astype(dtype)
    bias = (params['bconv'] * beta).reshape(C, 1).astype(jnp.float32)
    alpha = params['alpha'].reshape(C, 1).astype(jnp.float32)

    # ---- GammaEncoding hoisted out of the kernel (B x C work), kept in f32 ----
    count = C // 2
    step = jnp.arange(count, dtype=jnp.float32) / count
    enc = time.astype(jnp.float32)[:, None] * jnp.exp(
        jnp.float32(math.log(10000.0)) * step)[None, :]
    enc = jnp.concatenate([jnp.sin(enc), jnp.cos(enc)], axis=-1)          # (B, C)
    lin = enc @ params['wlin'].astype(jnp.float32).T + params['blin'].astype(jnp.float32)
    emb = jnp.where(lin >= 0, lin, params['aemb'][None, :] * lin)         # (B, C)
    emb = emb.reshape(B, C, 1).astype(jnp.float32)

    # ---- channels-major im2col: (B, 9*C, H*W); conv becomes ONE matmul ----
    xpad = jnp.pad(x_nchw, ((0, 0), (0, 0), (d, d), (d, d)))   # zero padding
    taps = [xpad[:, :, kh * d:kh * d + H, kw * d:kw * d + W]
            for kh in range(3) for kw in range(3)]
    patches = jnp.concatenate(taps, axis=1).reshape(B, 9 * C, H * W)

    n_rows = H * W
    if row_tile is None:
        row_tile = _pick_row_tile(n_rows, C, jnp.dtype(dtype).itemsize)
    assert n_rows % row_tile == 0
    rt = n_rows // row_tile

    kernel = functools.partial(_resconv_kernel, C=C)

    out_flat = pl.pallas_call(
        kernel,
        out_shape=jax.ShapeDtypeStruct((B, C, n_rows), dtype),
        grid=(B, rt),
        in_specs=[
            pl.BlockSpec((1, 9 * C, row_tile), lambda b, r: (b, 0, r)),
            pl.BlockSpec((C, 9 * C), lambda b, r: (0, 0)),
            pl.BlockSpec((C, 1), lambda b, r: (0, 0)),
            pl.BlockSpec((C, 1), lambda b, r: (0, 0)),
            pl.BlockSpec((1, C, 1), lambda b, r: (b, 0, 0)),
        ],
        out_specs=pl.BlockSpec((1, C, row_tile), lambda b, r: (b, 0, r)),
        compiler_params=pltpu.CompilerParams(
            dimension_semantics=("parallel", "parallel")),
    )(patches, w9t, bias, alpha, emb)

    # Output is already NCHW-flattened: just reshape the spatial dim.
    return out_flat.reshape(B, C, H, W), time


def ref_forward(x, time, params, dilation=1):
    """Pure-JAX reference matching the PyTorch module semantics."""
    d = dilation
    conv = jax.lax.conv_general_dilated(
        x, params['wconv'], window_strides=(1, 1),
        padding=[(d, d), (d, d)], rhs_dilation=(d, d),
        dimension_numbers=('NCHW', 'OIHW', 'NCHW'))
    conv = conv + params['bconv'][None, :, None, None]
    z = conv * params['beta'][None, :, None, None] + x
    y = jnp.where(z >= 0, z, params['alpha'][None, :, None, None] * z)

    C = x.shape[1]
    count = C // 2
    step = jnp.arange(count, dtype=time.dtype) / count
    enc = time[:, None] * jnp.exp(math.log(10000.0) * step[None, :])
    enc = jnp.concatenate([jnp.sin(enc), jnp.cos(enc)], axis=-1)
    lin = enc @ params['wlin'].T + params['blin']
    emb = jnp.where(lin >= 0, lin, params['aemb'][None, :] * lin)
    emb = emb.reshape(-1, C, 1, 1)
    return y + emb, time


if __name__ == "__main__":
    B, C, H, W = 2, 8, 16, 16
    key = jax.random.PRNGKey(0)
    keys = jax.random.split(key, 6)

    params = {
        'wconv': jax.random.normal(keys[0], (C, C, 3, 3), jnp.float32) * 0.1,
        'bconv': jax.random.normal(keys[1], (C,), jnp.float32) * 0.1,
        'beta': jnp.ones((C,), jnp.float32),          # nn.Parameter(torch.ones((1,c,1,1)))
        'alpha': jnp.full((C,), 0.2, jnp.float32),    # PReLU(c, 0.2)
        'wlin': jax.random.normal(keys[2], (C, C), jnp.float32) * 0.1,
        'blin': jax.random.normal(keys[3], (C,), jnp.float32) * 0.1,
        'aemb': jnp.full((C,), 0.25, jnp.float32),    # PReLU(dim) default init
    }

    x = jax.random.normal(keys[4], (B, C, H, W), jnp.float32)
    time = jax.random.uniform(keys[5], (B,), jnp.float32)

    out, t_out = resconv_forward(x, time, params, dilation=1)
    out = jax.block_until_ready(out)

    ref_out, _ = ref_forward(x, time, params, dilation=1)
    np.testing.assert_allclose(np.asarray(out), np.asarray(ref_out),
                               rtol=1e-4, atol=1e-5)
    assert t_out.shape == time.shape

    print("KERNEL_OK")
</pallas_src>

<mosaic_0001>
module attributes {stable_mosaic.version = 11 : i64} {
  func.func @_resconv_kernel(%arg0: i32, %arg1: i32, %arg2: memref<1x72x256xf32, #tpu.memory_space<vmem>>, %arg3: memref<8x72xf32, #tpu.memory_space<vmem>>, %arg4: memref<8x1xf32, #tpu.memory_space<vmem>>, %arg5: memref<8x1xf32, #tpu.memory_space<vmem>>, %arg6: memref<1x8x1xf32, #tpu.memory_space<vmem>>, %arg7: memref<1x8x256xf32, #tpu.memory_space<vmem>>) attributes {dimension_semantics = [#tpu.dimension_semantics<parallel>, #tpu.dimension_semantics<parallel>], iteration_bounds = array<i64: 2, 1>, scalar_prefetch = 0 : i64, scratch_operands = 0 : i64, tpu.core_type = #tpu.core_type<tc>, window_params = [{transform_indices = @transform_0, window_bounds = array<i64: 1, 72, 256>}, {pipeline_mode = #tpu.pipeline_mode<synchronous>, transform_indices = @transform_1, window_bounds = array<i64: 8, 72>}, {pipeline_mode = #tpu.pipeline_mode<synchronous>, transform_indices = @transform_2, window_bounds = array<i64: 8, 1>}, {pipeline_mode = #tpu.pipeline_mode<synchronous>, transform_indices = @transform_3, window_bounds = array<i64: 8, 1>}, {transform_indices = @transform_4, window_bounds = array<i64: 1, 8, 1>}, {transform_indices = @transform_5, window_bounds = array<i64: 1, 8, 256>}]} {
    %c0 = arith.constant 0 : index
    %c0_0 = arith.constant 0 : index
    %c0_1 = arith.constant 0 : index
    %0 = vector.load %arg2[%c0, %c0_0, %c0_1] : memref<1x72x256xf32, #tpu.memory_space<vmem>>, vector<1x72x256xf32>
    %1 = vector.shape_cast %0 : vector<1x72x256xf32> to vector<72x256xf32>
    %c0_2 = arith.constant 0 : index
    %c0_3 = arith.constant 0 : index
    %2 = vector.load %arg3[%c0_2, %c0_3] : memref<8x72xf32, #tpu.memory_space<vmem>>, vector<8x72xf32>
    %cst = arith.constant dense<0.000000e+00> : vector<8x256xf32>
    %3 = tpu.matmul %2, %1, %cst {dimension_numbers = #tpu.dot_dimension_numbers<[1], [0], [0], [1], [0, 0, 1, 1], [], []>} : vector<8x72xf32>, vector<72x256xf32>, vector<8x256xf32> -> vector<8x256xf32>
    %4 = vector.extract_strided_slice %1 {offsets = [32, 0], sizes = [8, 256], strides = [1, 1]} : vector<72x256xf32> to vector<8x256xf32>
    %c0_4 = arith.constant 0 : index
    %c0_5 = arith.constant 0 : index
    %5 = vector.load %arg4[%c0_4, %c0_5] : memref<8x1xf32, #tpu.memory_space<vmem>>, vector<8x1xf32>
    %6 = vector.broadcast %5 : vector<8x1xf32> to vector<8x256xf32>
    %7 = arith.addf %3, %6 : vector<8x256xf32>
    %8 = arith.addf %7, %4 : vector<8x256xf32>
    %cst_6 = arith.constant 0.000000e+00 : f32
    %9 = vector.broadcast %cst_6 : f32 to vector<8x256xf32>
    %10 = arith.cmpf oge, %8, %9 : vector<8x256xf32>
    %c0_7 = arith.constant 0 : index
    %c0_8 = arith.constant 0 : index
    %11 = vector.load %arg5[%c0_7, %c0_8] : memref<8x1xf32, #tpu.memory_space<vmem>>, vector<8x1xf32>
    %12 = vector.broadcast %11 : vector<8x1xf32> to vector<8x256xf32>
    %13 = arith.mulf %12, %8 : vector<8x256xf32>
    %14 = arith.select %10, %8, %13 : vector<8x256xi1>, vector<8x256xf32>
    %c0_9 = arith.constant 0 : index
    %c0_10 = arith.constant 0 : index
    %c0_11 = arith.constant 0 : index
    %15 = vector.load %arg6[%c0_9, %c0_10, %c0_11] : memref<1x8x1xf32, #tpu.memory_space<vmem>>, vector<1x8x1xf32>
    %16 = vector.shape_cast %15 : vector<1x8x1xf32> to vector<8x1xf32>
    %17 = vector.broadcast %16 : vector<8x1xf32> to vector<8x256xf32>
    %18 = arith.addf %14, %17 : vector<8x256xf32>
    %c0_12 = arith.constant 0 : index
    %c0_13 = arith.constant 0 : index
    %c0_14 = arith.constant 0 : index
    %19 = vector.load %arg7[%c0_12, %c0_13, %c0_14] : memref<1x8x256xf32, #tpu.memory_space<vmem>>, vector<1x8x256xf32>
    %20 = vector.shape_cast %19 : vector<1x8x256xf32> to vector<8x256xf32>
    %21 = vector.shape_cast %18 : vector<8x256xf32> to vector<1x8x256xf32>
    tpu.vector_store %arg7[%c0_12, %c0_13, %c0_14], %21 {strides = array<i32>} : memref<1x8x256xf32, #tpu.memory_space<vmem>>, vector<1x8x256xf32>,
    return
  }
  func.func @transform_0(%arg0: i32, %arg1: i32) -> (i32, i32, i32) {
    %c0_i32 = arith.constant 0 : i32
    %c0_i32_0 = arith.constant 0 : i32
    return %arg0, %c0_i32, %arg1 : i32, i32, i32
  }
  func.func @transform_1(%arg0: i32, %arg1: i32) -> (i32, i32) {
    %c0_i32 = arith.constant 0 : i32
    %c0_i32_0 = arith.constant 0 : i32
    %c0_i32_1 = arith.constant 0 : i32
    return %c0_i32, %c0_i32_0 : i32, i32
  }
  func.func @transform_2(%arg0: i32, %arg1: i32) -> (i32, i32) {
    %c0_i32 = arith.constant 0 : i32
    %c0_i32_0 = arith.constant 0 : i32
    %c0_i32_1 = arith.constant 0 : i32
    return %c0_i32, %c0_i32_0 : i32, i32
  }
  func.func @transform_3(%arg0: i32, %arg1: i32) -> (i32, i32) {
    %c0_i32 = arith.constant 0 : i32
    %c0_i32_0 = arith.constant 0 : i32
    %c0_i32_1 = arith.constant 0 : i32
    return %c0_i32, %c0_i32_0 : i32, i32
  }
  func.func @transform_4(%arg0: i32, %arg1: i32) -> (i32, i32, i32) {
    %c0_i32 = arith.constant 0 : i32
    %c0_i32_0 = arith.constant 0 : i32
    %c0_i32_1 = arith.constant 0 : i32
    return %arg0, %c0_i32, %c0_i32_0 : i32, i32, i32
  }
  func.func @transform_5(%arg0: i32, %arg1: i32) -> (i32, i32, i32) {
    %c0_i32 = arith.constant 0 : i32
    %c0_i32_0 = arith.constant 0 : i32
    return %arg0, %c0_i32, %arg1 : i32, i32, i32
  }
}

</mosaic_0001>

<llo_original>
// kernel: tpu_custom_call.1
$region0: #{tpu_custom_call.1}
  #allocation0 [shape = 'u32[]', space=smem, size = 0x4, offset = 0x4, fixed_abs, tag = 'smem constant byte address 0x4 - core index']
  #allocation1 [shape = 'u32[72,128]{1,0:T(1,128)}', space=vmem, size = 0x9000, scoped, tag = 'internal scratch']
  %s0 = inlined_call_operand.hbm [shape: f32[2,72,256], index: 0, kind: input, shape index: {}]
  %s1 = inlined_call_operand.vmem [shape: f32[8,72], index: 1, kind: input, shape index: {}]
  %s2 = inlined_call_operand.vmem [shape: f32[8,1], index: 2, kind: input, shape index: {}]
  %s3 = inlined_call_operand.vmem [shape: f32[8,1], index: 3, kind: input, shape index: {}]
  %s4 = inlined_call_operand.vmem [shape: f32[2,8,1], index: 4, kind: input, shape index: {}]
  %s5 = inlined_call_operand.hbm [shape: f32[2,8,256], index: 5, kind: output, shape index: {}]
  %s6 = sld [smem:[#allocation0]]
  $region57: #{tpu_custom_call.1} parent=0
    _
  %s8 = ssub.s32 1, %s6
  %s9 = scalar_select 0, %s8, %s6
  $region1: #{tpu_custom_call.1} parent=0
    #allocation2 [shape = 'u8[147456]{0}', space=vmem, size = 0x24000, scoped, tag = 'input window, operand 0']
    #allocation3 [shape = 's32[2]{0}', space=sflag, size = 0x8, scoped, tag = 'scoped memory for tpu_custom_call.1']
    #allocation4 [shape = 's32[2]{0}', space=sflag, size = 0x8, scoped, tag = 'scoped memory for tpu_custom_call.1']
    #allocation5 [shape = 'u8[16384]{0}', space=vmem, size = 0x4000, scoped, tag = 'output window, operand 0']
    %10 = vsyncpa [#allocation3], 0
    %s11 = scalar_lea.sflag [#allocation3], 1
    %12 = vsyncpa %s11, 0
    %13 = vsyncpa [#allocation4], 0
    %s14 = scalar_lea.sflag [#allocation4], 1
    %15 = vsyncpa %s14, 0
    loop: start=0, step=1, limit=4
    $region2: #{tpu_custom_call.1} parent=1 // loop_pre_header
      _
    $region3: #{tpu_custom_call.1} parent=1 // loop_header
      %s17 = sphi 0, %s21
      %p18 = scmp.ge.s32.totalorder %s17, 4
      %s24 = sphi 0, %s36
      %s25 = sphi 0, %s32
      %s26 = sphi 0, %s24
      %s27 = sphi 0, %s25
      %s28 = sphi 0, %s26
      %s29 = sphi 0, %s27
      %s41 = sphi 0, %s43
      %s44 = sphi 0, %s41
      %s45 = sphi 0, %s44
      %s61 = sphi 0, %s45
      %s65 = sphi 0, %s65
      %s67 = sphi 0, %s65
      %s68 = sphi 0, %s67
      %s82 = sphi 0, %s68
      %s86 = sphi 0, %s86
      %s88 = sphi 0, %s86
      %s89 = sphi 0, %s88
      %s103 = sphi 0, %s89
      %s107 = sphi 0, %s107
      %s109 = sphi 0, %s107
      %s110 = sphi 0, %s109
      %s124 = sphi 0, %s110
      %s130 = sphi 0, %s132
      %s133 = sphi 0, %s130
      %s134 = sphi 0, %s133
      %s150 = sphi 0, %s134
      %s158 = sphi 0, %s160
      %s161 = sphi 0, %s158
      %s162 = sphi 0, %s161
      %s178 = sphi 0, %s162
    $region4: #{tpu_custom_call.1} parent=1 // loop_header_branch
      %20 = sbr.rel (%p18) target = $region8
    $region5: #{tpu_custom_call.1} parent=1 // loop_body
      %s22 = ssub.s32 %s17, 1
      %s23 = ssub.s32 %s17, 2
      %s30 = sadd.s32 1, %s25
      %p31 = scmp.ge.s32.totalorder %s30, 1
      %s32 = scalar_select %p31, 0, %s30
      %s33 = sadd.s32 1, %s24
      %s34 = scalar_select %p31, %s33, %s24
      %p35 = scmp.ge.s32.totalorder %s34, 2
      %s36 = scalar_select %p35, 0, %s34
      %s37 = ssub.s32 %s24, %s36
      %s38 = ssub.s32 %s25, %s32
      %s39 = sor.u32 %s37, %s38
      %p40 = scmp.eq.s32.totalorder %s39, 0
      %s42 = sadd.s32 %s41, 1
      %s43 = scalar_select %p40, %s41, %s42
      %p46 = pneg %p40
      %p47 = scmp.eq.s32.totalorder %s17, 1
      %p48 = por %p46, %p47
      %p49 = scmp.ne.s32.totalorder %s41, %s44
      %p50 = scmp.eq.s32.totalorder %s17, 0
      %p51 = por %p49, %p50
      %p52 = scmp.ne.s32.totalorder %s41, %s44
      %p53 = scmp.eq.s32.totalorder %s22, 1
      %p54 = por %p52, %p53
      %p55 = scmp.ne.s32.totalorder %s44, %s45
      %p56 = scmp.eq.s32.totalorder %s22, 0
      %p57 = por %p55, %p56
      %p58 = scmp.ne.s32.totalorder %s44, %s45
      %p59 = scmp.eq.s32.totalorder %s23, 1
      %p60 = por %p58, %p59
      %p62 = scmp.ne.s32.totalorder %s45, %s61
      %p63 = scmp.eq.s32.totalorder %s23, 0
      %p64 = por %p62, %p63
      %s66 = sadd.s32 %s65, 1
      %p69 = scmp.eq.s32.totalorder %s17, 1
      %p70 = scmp.ne.s32.totalorder %s65, %s67
      %p71 = scmp.eq.s32.totalorder %s17, 0
      %p72 = por %p70, %p71
      %p73 = scmp.ne.s32.totalorder %s65, %s67
      %p74 = scmp.eq.s32.totalorder %s22, 1
      %p75 = por %p73, %p74
      %p76 = scmp.ne.s32.totalorder %s67, %s68
      %p77 = scmp.eq.s32.totalorder %s22, 0
      %p78 = por %p76, %p77
      %p79 = scmp.ne.s32.totalorder %s67, %s68
      %p80 = scmp.eq.s32.totalorder %s23, 1
      %p81 = por %p79, %p80
      %p83 = scmp.ne.s32.totalorder %s68, %s82
      %p84 = scmp.eq.s32.totalorder %s23, 0
      %p85 = por %p83, %p84
      %s87 = sadd.s32 %s86, 1
      %p90 = scmp.eq.s32.totalorder %s17, 1
      %p91 = scmp.ne.s32.totalorder %s86, %s88
      %p92 = scmp.eq.s32.totalorder %s17, 0
      %p93 = por %p91, %p92
      %p94 = scmp.ne.s32.totalorder %s86, %s88
      %p95 = scmp.eq.s32.totalorder %s22, 1
      %p96 = por %p94, %p95
      %p97 = scmp.ne.s32.totalorder %s88, %s89
      %p98 = scmp.eq.s32.totalorder %s22, 0
      %p99 = por %p97, %p98
      %p100 = scmp.ne.s32.totalorder %s88, %s89
      %p101 = scmp.eq.s32.totalorder %s23, 1
      %p102 = por %p100, %p101
      %p104 = scmp.ne.s32.totalorder %s89, %s103
      %p105 = scmp.eq.s32.totalorder %s23, 0
      %p106 = por %p104, %p105
      %s108 = sadd.s32 %s107, 1
      %p111 = scmp.eq.s32.totalorder %s17, 1
      %p112 = scmp.ne.s32.totalorder %s107, %s109
      %p113 = scmp.eq.s32.totalorder %s17, 0
      %p114 = por %p112, %p113
      %p115 = scmp.ne.s32.totalorder %s107, %s109
      %p116 = scmp.eq.s32.totalorder %s22, 1
      %p117 = por %p115, %p116
      %p118 = scmp.ne.s32.totalorder %s109, %s110
      %p119 = scmp.eq.s32.totalorder %s22, 0
      %p120 = por %p118, %p119
      %p121 = scmp.ne.s32.totalorder %s109, %s110
      %p122 = scmp.eq.s32.totalorder %s23, 1
      %p123 = por %p121, %p122
      %p125 = scmp.ne.s32.totalorder %s110, %s124
      %p126 = scmp.eq.s32.totalorder %s23, 0
      %p127 = por %p125, %p126
      %s128 = ssub.s32 %s24, %s36
      %p129 = scmp.eq.s32.totalorder %s128, 0
      %s131 = sadd.s32 %s130, 1
      %s132 = scalar_select %p129, %s130, %s131
      %p135 = pneg %p129
      %p136 = scmp.eq.s32.totalorder %s17, 1
      %p137 = por %p135, %p136
      %p138 = scmp.ne.s32.totalorder %s130, %s133
      %p139 = scmp.eq.s32.totalorder %s17, 0
      %p140 = por %p138, %p139
      %p141 = scmp.ne.s32.totalorder %s130, %s133
      %p142 = scmp.eq.s32.totalorder %s22, 1
      %p143 = por %p141, %p142
      %p144 = scmp.ne.s32.totalorder %s133, %s134
      %p145 = scmp.eq.s32.totalorder %s22, 0
      %p146 = por %p144, %p145
      %p147 = scmp.ne.s32.totalorder %s133, %s134
      %p148 = scmp.eq.s32.totalorder %s23, 1
      %p149 = por %p147, %p148
      %p151 = scmp.ne.s32.totalorder %s134, %s150
      %p152 = scmp.eq.s32.totalorder %s23, 0
      %p153 = por %p151, %p152
      %s154 = ssub.s32 %s24, %s36
      %s155 = ssub.s32 %s25, %s32
      %s156 = sor.u32 %s154, %s155
      %p157 = scmp.eq.s32.totalorder %s156, 0
      %s159 = sadd.s32 %s158, 1
      %s160 = scalar_select %p157, %s158, %s159
      %p163 = pneg %p157
      %p164 = scmp.eq.s32.totalorder %s17, 1
      %p165 = por %p163, %p164
      %p166 = scmp.ne.s32.totalorder %s158, %s161
      %p167 = scmp.eq.s32.totalorder %s17, 0
      %p168 = por %p166, %p167
      %p169 = scmp.ne.s32.totalorder %s158, %s161
      %p170 = scmp.eq.s32.totalorder %s22, 1
      %p171 = por %p169, %p170
      %p172 = scmp.ne.s32.totalorder %s161, %s162
      %p173 = scmp.eq.s32.totalorder %s22, 0
      %p174 = por %p172, %p173
      %p175 = scmp.ne.s32.totalorder %s161, %s162
      %p176 = scmp.eq.s32.totalorder %s23, 1
      %p177 = por %p175, %p176
      %p179 = scmp.ne.s32.totalorder %s162, %s178
      %p180 = scmp.eq.s32.totalorder %s23, 0
      %p181 = por %p179, %p180
      %p182 = scmp.le.s32.totalorder 1, %s17
      %p183 = scmp.lt.s32.totalorder %s17, 3
      %p184 = pnand %p182, %p183
      %p185 = pneg %p184
      // Predicated region
      $region9: #{tpu_custom_call.1} parent=5 // pred_check
        _
      $region10: #{tpu_custom_call.1} parent=5 // pred_check_branch
        %187 = sbr.rel (%p184) target = $region12
      $region11: #{tpu_custom_call.1} parent=5 // pred_region
        %s188 = ssub.s32 %s17, 1
        // Predicated region
        $region13: #{tpu_custom_call.1} parent=11 // pred_check
          %p189 = pneg %p78
        $region14: #{tpu_custom_call.1} parent=11 // pred_check_branch
          %191 = sbr.rel (%p189) target = $region16
        $region15: #{tpu_custom_call.1} parent=11 // pred_region
          _
        $region16: #{tpu_custom_call.1} parent=11 // pred_fallthru
          _
        // Predicated region
        $region17: #{tpu_custom_call.1} parent=11 // pred_check
          %p192 = pneg %p99
        $region18: #{tpu_custom_call.1} parent=11 // pred_check_branch
          %194 = sbr.rel (%p192) target = $region20
        $region19: #{tpu_custom_call.1} parent=11 // pred_region
          _
        $region20: #{tpu_custom_call.1} parent=11 // pred_fallthru
          _
        // Predicated region
        $region21: #{tpu_custom_call.1} parent=11 // pred_check
          %p195 = pneg %p120
        $region22: #{tpu_custom_call.1} parent=11 // pred_check_branch
          %197 = sbr.rel (%p195) target = $region24
        $region23: #{tpu_custom_call.1} parent=11 // pred_region
          _
        $region24: #{tpu_custom_call.1} parent=11 // pred_fallthru
          _
      $region12: #{tpu_custom_call.1} parent=5 // pred_fallthru
        _
      %p198 = scmp.lt.s32.totalorder %s17, 2
      // Predicated region
      $region25: #{tpu_custom_call.1} parent=5 // pred_check
        %p199 = pneg %p198
      $region26: #{tpu_custom_call.1} parent=5 // pred_check_branch
        %201 = sbr.rel (%p199) target = $region28
      $region27: #{tpu_custom_call.1} parent=5 // pred_region
        // Predicated region
        $region29: #{tpu_custom_call.1} parent=27 // pred_check
          %p202 = pneg %p51
        $region30: #{tpu_custom_call.1} parent=27 // pred_check_branch
          %204 = sbr.rel (%p202) target = $region32
        $region31: #{tpu_custom_call.1} parent=27 // pred_region
          %s205 = sand.u32 %s41, 1
          %s206 = scalar_lea.sflag [#allocation3], %s205
          %s207 = sand.u32 %s41, 1
          %s208 = smul.addr %s207, 144
          %s209 = scalar_lea.vmem [#allocation2], %s208
          %s210 = smul.u32 2, %s25
          %212 = vsyncadd %s206, 0
          %s213 = smul.addr %s24, 18
          %s214 = sadd.s32 %s210, %s213
          %s215 = smul.addr %s214, 8
          %s216 = scalar_lea.hbm %s0, %s215
          %s217 = sshll.u32 %s216, 4
          %s218 = int_to_ptr.hbm [resolvable:$true] %s217
          %s219 = sshll.u32 %s209, 4
          %s220 = int_to_ptr.vmem [resolvable:$true] %s219
          %225 = dma.hbm_to_vmem [thread:$0]  %s218, 2304, %s220, %s206, 256, 256, 16
        $region32: #{tpu_custom_call.1} parent=27 // pred_fallthru
          _
        // Predicated region
        $region33: #{tpu_custom_call.1} parent=27 // pred_check
          %p226 = pneg %p140
        $region34: #{tpu_custom_call.1} parent=27 // pred_check_branch
          %228 = sbr.rel (%p226) target = $region36
        $region35: #{tpu_custom_call.1} parent=27 // pred_region
          %p229 = scmp.lt.s32.totalorder %s24, 1
          %s230 = scalar_select %p229, %s24, 1
          %s231 = smul.addr %s230, 8
          %s232 = scalar_lea.vmem %s4, %s231
        $region36: #{tpu_custom_call.1} parent=27 // pred_fallthru
          _
      $region28: #{tpu_custom_call.1} parent=5 // pred_fallthru
        _
      %p233 = scmp.le.s32.totalorder 1, %s17
      %p234 = scmp.lt.s32.totalorder %s17, 3
      %p235 = pnand %p233, %p234
      %p236 = pneg %p235
      // Predicated region
      $region37: #{tpu_custom_call.1} parent=5 // pred_check
        _
      $region38: #{tpu_custom_call.1} parent=5 // pred_check_branch
        %238 = sbr.rel (%p235) target = $region40
      $region39: #{tpu_custom_call.1} parent=5 // pred_region
        %s239 = ssub.s32 %s17, 1
        %s240 = sand.u32 %s44, 1
        %s241 = scalar_lea.sflag [#allocation3], %s240
        %s242 = sand.u32 %s44, 1
        %s243 = smul.addr %s242, 144
        %s244 = scalar_lea.vmem [#allocation2], %s243
        // Predicated region
        $region41: #{tpu_custom_call.1} parent=39 // pred_check
          %p245 = pneg %p57
        $region42: #{tpu_custom_call.1} parent=39 // pred_check_branch
          %247 = sbr.rel (%p245) target = $region44
        $region43: #{tpu_custom_call.1} parent=39 // pred_region
          %249 = dma.done %s241, 2304
        $region44: #{tpu_custom_call.1} parent=39 // pred_fallthru
          _
        %s250 = sand.u32 %s44, 1
        %s251 = scalar_lea.sflag [#allocation3], %s250
        %s252 = sand.u32 %s44, 1
        %s253 = smul.addr %s252, 144
        %s254 = scalar_lea.vmem [#allocation2], %s253
        %p255 = pneg %p57
        %p256 = pneg %p54
        %p257 = pneg %p78
        %p258 = pneg %p75
        %p259 = pneg %p99
        %p260 = pneg %p96
        %p261 = pneg %p120
        %p262 = pneg %p117
        %p263 = scmp.lt.s32.totalorder %s26, 1
        %s264 = scalar_select %p263, %s26, 1
        %s265 = smul.addr %s264, 8
        %s266 = scalar_lea.vmem %s4, %s265
        %p267 = pneg %p146
        %p268 = pneg %p143
        %p269 = pneg %p174
        %p270 = pneg %p171
        %s271 = sand.u32 %s161, 1
        %s272 = scalar_lea.sflag [#allocation4], %s271
        %s273 = sand.u32 %s161, 1
        %s274 = smul.addr %s273, 16
        %s275 = scalar_lea.vmem [#allocation5], %s274
        %s276 = smul.u32 2, %s27
        %p277 = scmp.lt.s32.totalorder %s26, 1
        %s278 = scalar_select %p277, %s26, 1
        %s279 = smul.addr %s278, 8
        %s280 = scalar_lea.vmem %s4, %s279
        %s281 = smul.u32 2, %s27
        %v282 = vld [vmem:[%s244] sm:$0xff]
        %v283 = vld [vmem:[%s244 + $0x8] sm:$0xff]
        %v284 = vld [vmem:[%s244 + $0x10] sm:$0xff]
        %v285 = vld [vmem:[%s244 + $0x18] sm:$0xff]
        %v286 = vld [vmem:[%s244 + $0x20] sm:$0xff]
        %v287 = vld [vmem:[%s244 + $0x28] sm:$0xff]
        %v288 = vld [vmem:[%s244 + $0x30] sm:$0xff]
        %v289 = vld [vmem:[%s244 + $0x38] sm:$0xff]
        %v290 = vld [vmem:[%s244 + $0x40] sm:$0xff]
        %v291 = vld [vmem:[%s244 + $0x48] sm:$0xff]
        %v292 = vld [vmem:[%s244 + $0x50] sm:$0xff]
        %v293 = vld [vmem:[%s244 + $0x58] sm:$0xff]
        %v294 = vld [vmem:[%s244 + $0x60] sm:$0xff]
        %v295 = vld [vmem:[%s244 + $0x68] sm:$0xff]
        %v296 = vld [vmem:[%s244 + $0x70] sm:$0xff]
        %v297 = vld [vmem:[%s244 + $0x78] sm:$0xff]
        %v298 = vld [vmem:[%s244 + $0x80] sm:$0xff]
        %v299 = vld [vmem:[%s244 + $0x88] sm:$0xff]
        %v300 = vld [vmem:[%s1] sm:$0xff]
        %v301 = vld [vmem:[%s2] sm:$0xff]
        %303 = vset.pattern.permute.xlu0 0
        %304 = vperm.xlu0 %303, %v301
        %v305 = vpop.permute.xlu0 %304
        %vm307 = vcmask 588800
        %v309 = vsel %vm307, %v300, 0
        %311 = vmatpush.msra.mxu0 0.0
        %312 = vmatpush.msra.mxu0 0.0
        %313 = vmatpush.msra.mxu0 0.0
        %314 = vmatpush.msra.mxu0 0.0
        %315 = vmatpush.msra.mxu0 0.0
        %316 = vmatpush.msra.mxu0 0.0
        %317 = vmatpush.msra.mxu0 0.0
        %318 = vmatpush.msra.mxu0 %v298
        %319 = vmatpush.msra.mxu0 %v296
        %320 = vmatpush.msra.mxu0 %v294
        %321 = vmatpush.msra.mxu0 %v292
        %322 = vmatpush.msra.mxu0 %v290
        %323 = vmatpush.msra.mxu0 %v288
        %324 = vmatpush.msra.mxu0 %v286
        %325 = vmatpush.msra.mxu0 %v284
        %326 = vmatpush.msra.mxu0 %v282
        %327 = vmatmul.f32.gmra.mxu0 %v309
        %v328 = vpop.f32.mrf.mxu0
        %v329 = vadd.f32 %v305, %v328
        %330 = vdwg.mxu0
        %331 = vmatpush.msra.mxu0 0.0
        %332 = vmatpush.msra.mxu0 0.0
        %333 = vmatpush.msra.mxu0 0.0
        %334 = vmatpush.msra.mxu0 0.0
        %335 = vmatpush.msra.mxu0 0.0
        %336 = vmatpush.msra.mxu0 0.0
        %337 = vmatpush.msra.mxu0 0.0
        %338 = vmatpush.msra.mxu0 %v299
        %339 = vmatpush.msra.mxu0 %v297
        %340 = vmatpush.msra.mxu0 %v295
        %341 = vmatpush.msra.mxu0 %v293
        %342 = vmatpush.msra.mxu0 %v291
        %343 = vmatpush.msra.mxu0 %v289
        %344 = vmatpush.msra.mxu0 %v287
        %345 = vmatpush.msra.mxu0 %v285
        %346 = vmatpush.msra.mxu0 %v283
        %347 = vmatmul.f32.gmra.mxu0 %v309
        %v348 = vpop.f32.mrf.mxu0
        %v349 = vadd.f32 %v305, %v348
        %350 = vdwg.mxu0
        %v351 = vadd.f32 %v329, %v290
        %v352 = vadd.f32 %v349, %v291
        %vm353 = vcmp.ge.f32.partialorder %v351, 0.0
        %vm354 = vcmp.ge.f32.partialorder %v352, 0.0
        %v355 = vld [vmem:[%s3] sm:$0xff]
        %357 = vset.pattern.permute.xlu0 0
        %358 = vperm.xlu0 %357, %v355
        %v359 = vpop.permute.xlu0 %358
        %v361 = vmul.f32 %v359, %v351
        %v362 = vmul.f32 %v359, %v352
        %v363 = vsel %vm353, %v351, %v361
        %v364 = vsel %vm354, %v352, %v362
        %v365 = vld [vmem:[%s280] sm:$0xff]
        %367 = vset.pattern.permute.xlu0 0
        %368 = vperm.xlu0 %367, %v365
        %v369 = vpop.permute.xlu0 %368
        %v371 = vadd.f32 %v363, %v369
        %v372 = vadd.f32 %v364, %v369
        %373 = vst [vmem:[%s275] sm:$0xff] %v371
        %374 = vst [vmem:[%s275 + $0x8] sm:$0xff] %v372
        %s375 = sand.u32 %s161, 1
        %s376 = scalar_lea.sflag [#allocation4], %s375
        %s377 = sand.u32 %s161, 1
        %s378 = smul.addr %s377, 16
        %s379 = scalar_lea.vmem [#allocation5], %s378
        // Predicated region
        $region45: #{tpu_custom_call.1} parent=39 // pred_check
          %p380 = pneg %p171
        $region46: #{tpu_custom_call.1} parent=39 // pred_check_branch
          %382 = sbr.rel (%p380) target = $region48
        $region47: #{tpu_custom_call.1} parent=39 // pred_region
          %s383 = smul.u32 2, %s27
          %385 = vsyncadd %s376, 0
          %s386 = smul.addr %s26, 2
          %s387 = sadd.s32 %s383, %s386
          %s388 = smul.addr %s387, 8
          %s389 = scalar_lea.hbm %s5, %s388
          %s391 = sshll.u32 %s379, 4
          %s392 = int_to_ptr.vmem [resolvable:$true] %s391
          %s393 = sshll.u32 %s389, 4
          %s394 = int_to_ptr.hbm [resolvable:$true] %s393
          %396 = dma.vmem_to_hbm [thread:$0]  %s392, 256, %s394, %s376
        $region48: #{tpu_custom_call.1} parent=39 // pred_fallthru
          _
      $region40: #{tpu_custom_call.1} parent=5 // pred_fallthru
        _
      %p397 = scmp.le.s32.totalorder 2, %s17
      // Predicated region
      $region49: #{tpu_custom_call.1} parent=5 // pred_check
        %p398 = pneg %p397
      $region50: #{tpu_custom_call.1} parent=5 // pred_check_branch
        %400 = sbr.rel (%p398) target = $region52
      $region51: #{tpu_custom_call.1} parent=5 // pred_region
        %s401 = ssub.s32 %s17, 2
        // Predicated region
        $region53: #{tpu_custom_call.1} parent=51 // pred_check
          %p402 = pneg %p177
        $region54: #{tpu_custom_call.1} parent=51 // pred_check_branch
          %404 = sbr.rel (%p402) target = $region56
        $region55: #{tpu_custom_call.1} parent=51 // pred_region
          %s405 = sand.u32 %s162, 1
          %s406 = scalar_lea.sflag [#allocation4], %s405
          %s407 = sand.u32 %s162, 1
          %s408 = smul.addr %s407, 16
          %s409 = scalar_lea.vmem [#allocation5], %s408
          %411 = dma.done %s406, 256
        $region56: #{tpu_custom_call.1} parent=51 // pred_fallthru
          _
      $region52: #{tpu_custom_call.1} parent=5 // pred_fallthru
        _
    $region6: #{tpu_custom_call.1} parent=1 // loop_footer
      %s21 = sadd.s32 1, %s17
    $region7: #{tpu_custom_call.1} parent=1 // loop_footer_branch
      %16 = sbr.rel target = $region3
    $region8: #{tpu_custom_call.1} parent=1 // loop_exit
      _
    %412 = vsyncpa [#allocation3], 1
    %s413 = scalar_lea.sflag [#allocation3], 1
    %414 = vsyncpa %s413, 1
    %415 = vsyncpa [#allocation4], 1
    %s416 = scalar_lea.sflag [#allocation4], 1
    %417 = vsyncpa %s416, 1

</llo_original>
